<compile_context>
chip_gen: v7x
topology: tpu7x:2x2x1
jax: 0.10.0
libtpu: 0.0.40
codegen_flags: <defaults>
</compile_context>

<pallas_src>
import jax
import jax.numpy as jnp
from jax.experimental import pallas as pl
from jax.experimental.pallas import tpu as pltpu

IN_FEATURES = 512
OUT_FEATURES = 768
MAX_BLOCK_M = 512  # sized against v7x's 64 MiB VMEM; also fine on v5e/v6e


def _round_up(x, m):
    return ((x + m - 1) // m) * m


def dim_mapper_kernel(x_ref, w_ref, b_ref, o_ref):
    # x_ref: (bm, 512) bf16   w_ref: (512, 768) bf16 (resident)
    # b_ref: (1, 768) f32 (resident)   o_ref: (bm, 768) f32
    acc = jnp.dot(x_ref[...], w_ref[...], preferred_element_type=jnp.float32)
    o_ref[...] = (acc + b_ref[...]).astype(o_ref.dtype)


@jax.jit
def dim_mapper(x, conv_w, conv_b, fc_w, fc_b):
    """Dim_Mapper forward: Conv1d(1,1,k=1) -> Linear(512,768).

    x: (B, 1, 512) float32  ->  (B, 1, 768) float32.
    """
    B, C, L = x.shape
    assert C == 1 and L == IN_FEATURES

    # Fold conv scale/shift into the GEMM (computed once per jitted call; trivial cost,
    # and it removes a live (M,512) intermediate + a VPU mul-add per block in the kernel).
    cw = conv_w.reshape(())
    cb = conv_b.reshape(())
    w_eff = (cw * fc_w.T).astype(jnp.bfloat16)                                 # (512, 768)
    b_eff = (cb * jnp.sum(fc_w, axis=1) + fc_b).reshape(1, OUT_FEATURES)       # (1, 768) f32
    b_eff = b_eff.astype(jnp.float32)

    M = B * C
    x2d = x.reshape(M, L).astype(jnp.bfloat16)

    # Pad rows: at least to an 8-sublane multiple, and to a multiple of the row block.
    m_pad8 = _round_up(M, 8)
    block_m = min(MAX_BLOCK_M, m_pad8)
    m_pad = _round_up(m_pad8, block_m)
    if m_pad != M:
        x2d = jnp.pad(x2d, ((0, m_pad - M), (0, 0)))

    grid = (m_pad // block_m,)

    cost = pl.CostEstimate(
        flops=2 * m_pad * IN_FEATURES * OUT_FEATURES,
        transcendentals=0,
        bytes_accessed=(m_pad * IN_FEATURES * 2            # x  (bf16)
                        + IN_FEATURES * OUT_FEATURES * 2   # W  (bf16)
                        + OUT_FEATURES * 4                 # bias (f32)
                        + m_pad * OUT_FEATURES * 4),       # out (f32)
    )

    out2d = pl.pallas_call(
        dim_mapper_kernel,
        out_shape=jax.ShapeDtypeStruct((m_pad, OUT_FEATURES), jnp.float32),
        grid=grid,
        in_specs=[
            pl.BlockSpec((block_m, IN_FEATURES), lambda i: (i, 0)),           # x row block
            pl.BlockSpec((IN_FEATURES, OUT_FEATURES), lambda i: (0, 0)),      # resident W^T
            pl.BlockSpec((1, OUT_FEATURES), lambda i: (0, 0)),                # resident bias
        ],
        out_specs=pl.BlockSpec((block_m, OUT_FEATURES), lambda i: (i, 0)),
        compiler_params=pltpu.CompilerParams(
            dimension_semantics=("parallel",)),                               # v7x: 2 TCs
        cost_estimate=cost,
    )(x2d, w_eff, b_eff)

    return out2d[:M].reshape(B, C, OUT_FEATURES)


def init_params(key):
    # Deterministic init mimicking PyTorch defaults (uniform +/- 1/sqrt(fan_in)).
    k1, k2, k3, k4 = jax.random.split(key, 4)
    # Conv1d(1, 1, kernel_size=1): weight (1,1,1), bias (1,) -> stored as scalars.
    conv_w = jax.random.uniform(k1, (1,), jnp.float32, -1.0, 1.0)
    conv_b = jax.random.uniform(k2, (1,), jnp.float32, -1.0, 1.0)
    # Linear(512, 768): weight (768, 512), bias (768,)
    bound = 1.0 / jnp.sqrt(jnp.float32(IN_FEATURES))
    fc_w = jax.random.uniform(k3, (OUT_FEATURES, IN_FEATURES), jnp.float32, -bound, bound)
    fc_b = jax.random.uniform(k4, (OUT_FEATURES,), jnp.float32, -bound, bound)
    return conv_w, conv_b, fc_w, fc_b


if __name__ == "__main__":
    key = jax.random.PRNGKey(0)
    kx, kp = jax.random.split(key)
    conv_w, conv_b, fc_w, fc_b = init_params(kp)

    def ref_fn(x):
        # Pure-JAX f32 reference of the module's math.
        return (x * conv_w[0] + conv_b[0]) @ fc_w.T + fc_b

    # Small case (B=2): M=2 -> padded to 8 rows, single block, grid=(1,).
    x_small = jax.random.normal(kx, (2, 1, IN_FEATURES), jnp.float32)
    out_small = jax.block_until_ready(dim_mapper(x_small, conv_w, conv_b, fc_w, fc_b))
    assert out_small.shape == (2, 1, OUT_FEATURES)
    # bf16 matmul inputs with f32 accumulation -> looser tolerance vs. f32 reference.
    assert jnp.allclose(out_small, ref_fn(x_small), atol=3e-2, rtol=3e-2)

    # Larger case exercising the multi-block grid + tail padding (M=520 -> 1024, grid=(2,)).
    x_big = jax.random.normal(jax.random.PRNGKey(1), (520, 1, IN_FEATURES), jnp.float32)
    out_big = jax.block_until_ready(dim_mapper(x_big, conv_w, conv_b, fc_w, fc_b))
    assert out_big.shape == (520, 1, OUT_FEATURES)
    assert jnp.allclose(out_big, ref_fn(x_big), atol=3e-2, rtol=3e-2)

    print("KERNEL_OK")
</pallas_src>

<mosaic_0001>
module attributes {stable_mosaic.version = 11 : i64} {
  func.func @dim_mapper_kernel(%arg0: i32, %arg1: memref<8x512xbf16, #tpu.memory_space<vmem>>, %arg2: memref<512x768xbf16, #tpu.memory_space<vmem>>, %arg3: memref<1x768xf32, #tpu.memory_space<vmem>>, %arg4: memref<8x768xf32, #tpu.memory_space<vmem>>) attributes {dimension_semantics = [#tpu.dimension_semantics<parallel>], iteration_bounds = array<i64: 1>, scalar_prefetch = 0 : i64, scratch_operands = 0 : i64, tpu.core_type = #tpu.core_type<tc>, window_params = [{transform_indices = @transform_0, window_bounds = array<i64: 8, 512>}, {pipeline_mode = #tpu.pipeline_mode<synchronous>, transform_indices = @transform_1, window_bounds = array<i64: 512, 768>}, {pipeline_mode = #tpu.pipeline_mode<synchronous>, transform_indices = @transform_2, window_bounds = array<i64: 1, 768>}, {transform_indices = @transform_3, window_bounds = array<i64: 8, 768>}]} {
    %c0 = arith.constant 0 : index
    %c0_0 = arith.constant 0 : index
    %0 = vector.load %arg1[%c0, %c0_0] : memref<8x512xbf16, #tpu.memory_space<vmem>>, vector<8x512xbf16>
    %c0_1 = arith.constant 0 : index
    %c0_2 = arith.constant 0 : index
    %1 = vector.load %arg2[%c0_1, %c0_2] : memref<512x768xbf16, #tpu.memory_space<vmem>>, vector<512x768xbf16>
    %cst = arith.constant dense<0.000000e+00> : vector<8x768xf32>
    %2 = tpu.matmul %0, %1, %cst {dimension_numbers = #tpu.dot_dimension_numbers<[1], [0], [0], [1], [0, 0, 1, 1], [], []>} : vector<8x512xbf16>, vector<512x768xbf16>, vector<8x768xf32> -> vector<8x768xf32>
    %c0_3 = arith.constant 0 : index
    %c0_4 = arith.constant 0 : index
    %3 = vector.load %arg3[%c0_3, %c0_4] : memref<1x768xf32, #tpu.memory_space<vmem>>, vector<1x768xf32>
    %4 = vector.broadcast %3 : vector<1x768xf32> to vector<8x768xf32>
    %5 = arith.addf %2, %4 : vector<8x768xf32>
    %c0_5 = arith.constant 0 : index
    %c0_6 = arith.constant 0 : index
    %6 = vector.load %arg4[%c0_5, %c0_6] : memref<8x768xf32, #tpu.memory_space<vmem>>, vector<8x768xf32>
    tpu.vector_store %arg4[%c0_5, %c0_6], %5 {strides = array<i32>} : memref<8x768xf32, #tpu.memory_space<vmem>>, vector<8x768xf32>,
    return
  }
  func.func @transform_0(%arg0: i32) -> (i32, i32) {
    %c0_i32 = arith.constant 0 : i32
    %c0_i32_0 = arith.constant 0 : i32
    return %arg0, %c0_i32 : i32, i32
  }
  func.func @transform_1(%arg0: i32) -> (i32, i32) {
    %c0_i32 = arith.constant 0 : i32
    %c0_i32_0 = arith.constant 0 : i32
    %c0_i32_1 = arith.constant 0 : i32
    return %c0_i32, %c0_i32_0 : i32, i32
  }
  func.func @transform_2(%arg0: i32) -> (i32, i32) {
    %c0_i32 = arith.constant 0 : i32
    %c0_i32_0 = arith.constant 0 : i32
    %c0_i32_1 = arith.constant 0 : i32
    return %c0_i32, %c0_i32_0 : i32, i32
  }
  func.func @transform_3(%arg0: i32) -> (i32, i32) {
    %c0_i32 = arith.constant 0 : i32
    %c0_i32_0 = arith.constant 0 : i32
    return %arg0, %c0_i32 : i32, i32
  }
}

</mosaic_0001>

<llo_original>
// kernel: dim_mapper.1
$region0: #{dim_mapper.1}
  #allocation0 [shape = 'u32[]', space=smem, size = 0x4, offset = 0x4, fixed_abs, tag = 'smem constant byte address 0x4 - core index']
  #allocation1 [shape = 'u32[144,128]{1,0:T(1,128)}', space=vmem, size = 0x12000, scoped, tag = 'internal scratch']
  %s0 = inlined_call_operand.vmem [shape: bf16[8,512], index: 0, kind: input, shape index: {}]
  %s1 = inlined_call_operand.vmem [shape: bf16[512,768], index: 1, kind: input, shape index: {}]
  %s2 = inlined_call_operand.vmem [shape: f32[1,768], index: 2, kind: input, shape index: {}]
  %s3 = inlined_call_operand.vmem [shape: f32[8,768], index: 3, kind: output, shape index: {}]
  %s4 = sld [smem:[#allocation0]]
  $region22: #{dim_mapper.1} parent=0
    _
  %s6 = ssub.s32 1, %s4
  %s7 = scalar_select 0, %s6, %s4
  // Predicated region
  $region2: #{dim_mapper.1} parent=0 // pred_check
    _
  $region3: #{dim_mapper.1} parent=0 // pred_check_branch
    %9 = sbr.rel (0) target = $region5
  $region4: #{dim_mapper.1} parent=0 // pred_region
    _
  $region5: #{dim_mapper.1} parent=0 // pred_fallthru
    _
  // Predicated region
  $region6: #{dim_mapper.1} parent=0 // pred_check
    _
  $region7: #{dim_mapper.1} parent=0 // pred_check_branch
    %11 = sbr.rel (0) target = $region9
  $region8: #{dim_mapper.1} parent=0 // pred_region
    _
  $region9: #{dim_mapper.1} parent=0 // pred_fallthru
    _
  // Predicated region
  $region10: #{dim_mapper.1} parent=0 // pred_check
    _
  $region11: #{dim_mapper.1} parent=0 // pred_check_branch
    %13 = sbr.rel (0) target = $region13
  $region12: #{dim_mapper.1} parent=0 // pred_region
    _
  $region13: #{dim_mapper.1} parent=0 // pred_fallthru
    _
  %v14 = vld [vmem:[%s0] sm:$0xff]
  %v15 = vld [vmem:[%s0 + $0x8] sm:$0xff]
  %v16 = vld [vmem:[%s1] sm:$0xff]
  %v17 = vld [vmem:[%s1 + $0x8] sm:$0xff]
  %v18 = vld [vmem:[%s1 + $0x10] sm:$0xff]
  %v19 = vld [vmem:[%s1 + $0x18] sm:$0xff]
  %v20 = vld [vmem:[%s1 + $0x20] sm:$0xff]
  %v21 = vld [vmem:[%s1 + $0x28] sm:$0xff]
  %v22 = vld [vmem:[%s1 + $0x30] sm:$0xff]
  %v23 = vld [vmem:[%s1 + $0x38] sm:$0xff]
  %v24 = vld [vmem:[%s1 + $0x40] sm:$0xff]
  %v25 = vld [vmem:[%s1 + $0x48] sm:$0xff]
  %v26 = vld [vmem:[%s1 + $0x50] sm:$0xff]
  %v27 = vld [vmem:[%s1 + $0x58] sm:$0xff]
  %v28 = vld [vmem:[%s1 + $0x60] sm:$0xff]
  %v29 = vld [vmem:[%s1 + $0x68] sm:$0xff]
  %v30 = vld [vmem:[%s1 + $0x70] sm:$0xff]
  %v31 = vld [vmem:[%s1 + $0x78] sm:$0xff]
  %v32 = vld [vmem:[%s1 + $0x80] sm:$0xff]
  %v33 = vld [vmem:[%s1 + $0x88] sm:$0xff]
  %v34 = vld [vmem:[%s1 + $0x90] sm:$0xff]
  %v35 = vld [vmem:[%s1 + $0x98] sm:$0xff]
  %v36 = vld [vmem:[%s1 + $0xa0] sm:$0xff]
  %v37 = vld [vmem:[%s1 + $0xa8] sm:$0xff]
  %v38 = vld [vmem:[%s1 + $0xb0] sm:$0xff]
  %v39 = vld [vmem:[%s1 + $0xb8] sm:$0xff]
  %v40 = vld [vmem:[%s1 + $0xc0] sm:$0xff]
  %v41 = vld [vmem:[%s1 + $0xc8] sm:$0xff]
  %v42 = vld [vmem:[%s1 + $0xd0] sm:$0xff]
  %v43 = vld [vmem:[%s1 + $0xd8] sm:$0xff]
  %v44 = vld [vmem:[%s1 + $0xe0] sm:$0xff]
  %v45 = vld [vmem:[%s1 + $0xe8] sm:$0xff]
  %v46 = vld [vmem:[%s1 + $0xf0] sm:$0xff]
  %v47 = vld [vmem:[%s1 + $0xf8] sm:$0xff]
  %v48 = vld [vmem:[%s1 + $0x100] sm:$0xff]
  %v49 = vld [vmem:[%s1 + $0x108] sm:$0xff]
  %v50 = vld [vmem:[%s1 + $0x110] sm:$0xff]
  %v51 = vld [vmem:[%s1 + $0x118] sm:$0xff]
  %v52 = vld [vmem:[%s1 + $0x120] sm:$0xff]
  %v53 = vld [vmem:[%s1 + $0x128] sm:$0xff]
  %v54 = vld [vmem:[%s1 + $0x130] sm:$0xff]
  %v55 = vld [vmem:[%s1 + $0x138] sm:$0xff]
  %v56 = vld [vmem:[%s1 + $0x140] sm:$0xff]
  %v57 = vld [vmem:[%s1 + $0x148] sm:$0xff]
  %v58 = vld [vmem:[%s1 + $0x150] sm:$0xff]
  %v59 = vld [vmem:[%s1 + $0x158] sm:$0xff]
  %v60 = vld [vmem:[%s1 + $0x160] sm:$0xff]
  %v61 = vld [vmem:[%s1 + $0x168] sm:$0xff]
  %v62 = vld [vmem:[%s1 + $0x170] sm:$0xff]
  %v63 = vld [vmem:[%s1 + $0x178] sm:$0xff]
  %v64 = vld [vmem:[%s1 + $0x180] sm:$0xff]
  %v65 = vld [vmem:[%s1 + $0x188] sm:$0xff]
  %v66 = vld [vmem:[%s1 + $0x190] sm:$0xff]
  %v67 = vld [vmem:[%s1 + $0x198] sm:$0xff]
  %v68 = vld [vmem:[%s1 + $0x1a0] sm:$0xff]
  %v69 = vld [vmem:[%s1 + $0x1a8] sm:$0xff]
  %v70 = vld [vmem:[%s1 + $0x1b0] sm:$0xff]
  %v71 = vld [vmem:[%s1 + $0x1b8] sm:$0xff]
  %v72 = vld [vmem:[%s1 + $0x1c0] sm:$0xff]
  %v73 = vld [vmem:[%s1 + $0x1c8] sm:$0xff]
  %v74 = vld [vmem:[%s1 + $0x1d0] sm:$0xff]
  %v75 = vld [vmem:[%s1 + $0x1d8] sm:$0xff]
  %v76 = vld [vmem:[%s1 + $0x1e0] sm:$0xff]
  %v77 = vld [vmem:[%s1 + $0x1e8] sm:$0xff]
  %v78 = vld [vmem:[%s1 + $0x1f0] sm:$0xff]
  %v79 = vld [vmem:[%s1 + $0x1f8] sm:$0xff]
  %v80 = vld [vmem:[%s1 + $0x200] sm:$0xff]
  %v81 = vld [vmem:[%s1 + $0x208] sm:$0xff]
  %v82 = vld [vmem:[%s1 + $0x210] sm:$0xff]
  %v83 = vld [vmem:[%s1 + $0x218] sm:$0xff]
  %v84 = vld [vmem:[%s1 + $0x220] sm:$0xff]
  %v85 = vld [vmem:[%s1 + $0x228] sm:$0xff]
  %v86 = vld [vmem:[%s1 + $0x230] sm:$0xff]
  %v87 = vld [vmem:[%s1 + $0x238] sm:$0xff]
  %v88 = vld [vmem:[%s1 + $0x240] sm:$0xff]
  %v89 = vld [vmem:[%s1 + $0x248] sm:$0xff]
  %v90 = vld [vmem:[%s1 + $0x250] sm:$0xff]
  %v91 = vld [vmem:[%s1 + $0x258] sm:$0xff]
  %v92 = vld [vmem:[%s1 + $0x260] sm:$0xff]
  %v93 = vld [vmem:[%s1 + $0x268] sm:$0xff]
  %v94 = vld [vmem:[%s1 + $0x270] sm:$0xff]
  %v95 = vld [vmem:[%s1 + $0x278] sm:$0xff]
  %v96 = vld [vmem:[%s1 + $0x280] sm:$0xff]
  %v97 = vld [vmem:[%s1 + $0x288] sm:$0xff]
  %v98 = vld [vmem:[%s1 + $0x290] sm:$0xff]
  %v99 = vld [vmem:[%s1 + $0x298] sm:$0xff]
  %v100 = vld [vmem:[%s1 + $0x2a0] sm:$0xff]
  %v101 = vld [vmem:[%s1 + $0x2a8] sm:$0xff]
  %v102 = vld [vmem:[%s1 + $0x2b0] sm:$0xff]
  %v103 = vld [vmem:[%s1 + $0x2b8] sm:$0xff]
  %v104 = vld [vmem:[%s1 + $0x2c0] sm:$0xff]
  %v105 = vld [vmem:[%s1 + $0x2c8] sm:$0xff]
  %v106 = vld [vmem:[%s1 + $0x2d0] sm:$0xff]
  %v107 = vld [vmem:[%s1 + $0x2d8] sm:$0xff]
  %v108 = vld [vmem:[%s1 + $0x2e0] sm:$0xff]
  %v109 = vld [vmem:[%s1 + $0x2e8] sm:$0xff]
  %v110 = vld [vmem:[%s1 + $0x2f0] sm:$0xff]
  %v111 = vld [vmem:[%s1 + $0x2f8] sm:$0xff]
  %v112 = vld [vmem:[%s1 + $0x300] sm:$0xff]
  %v113 = vld [vmem:[%s1 + $0x308] sm:$0xff]
  %v114 = vld [vmem:[%s1 + $0x310] sm:$0xff]
  %v115 = vld [vmem:[%s1 + $0x318] sm:$0xff]
  %v116 = vld [vmem:[%s1 + $0x320] sm:$0xff]
  %v117 = vld [vmem:[%s1 + $0x328] sm:$0xff]
  %v118 = vld [vmem:[%s1 + $0x330] sm:$0xff]
  %v119 = vld [vmem:[%s1 + $0x338] sm:$0xff]
  %v120 = vld [vmem:[%s1 + $0x340] sm:$0xff]
  %v121 = vld [vmem:[%s1 + $0x348] sm:$0xff]
  %v122 = vld [vmem:[%s1 + $0x350] sm:$0xff]
  %v123 = vld [vmem:[%s1 + $0x358] sm:$0xff]
  %v124 = vld [vmem:[%s1 + $0x360] sm:$0xff]
  %v125 = vld [vmem:[%s1 + $0x368] sm:$0xff]
  %v126 = vld [vmem:[%s1 + $0x370] sm:$0xff]
  %v127 = vld [vmem:[%s1 + $0x378] sm:$0xff]
  %v128 = vld [vmem:[%s1 + $0x380] sm:$0xff]
  %v129 = vld [vmem:[%s1 + $0x388] sm:$0xff]
  %v130 = vld [vmem:[%s1 + $0x390] sm:$0xff]
  %v131 = vld [vmem:[%s1 + $0x398] sm:$0xff]
  %v132 = vld [vmem:[%s1 + $0x3a0] sm:$0xff]
  %v133 = vld [vmem:[%s1 + $0x3a8] sm:$0xff]
  %v134 = vld [vmem:[%s1 + $0x3b0] sm:$0xff]
  %v135 = vld [vmem:[%s1 + $0x3b8] sm:$0xff]
  %v136 = vld [vmem:[%s1 + $0x3c0] sm:$0xff]
  %v137 = vld [vmem:[%s1 + $0x3c8] sm:$0xff]
  %v138 = vld [vmem:[%s1 + $0x3d0] sm:$0xff]
  %v139 = vld [vmem:[%s1 + $0x3d8] sm:$0xff]
  %v140 = vld [vmem:[%s1 + $0x3e0] sm:$0xff]
  %v141 = vld [vmem:[%s1 + $0x3e8] sm:$0xff]
  %v142 = vld [vmem:[%s1 + $0x3f0] sm:$0xff]
  %v143 = vld [vmem:[%s1 + $0x3f8] sm:$0xff]
  %v144 = vld [vmem:[%s1 + $0x400] sm:$0xff]
  %v145 = vld [vmem:[%s1 + $0x408] sm:$0xff]
  %v146 = vld [vmem:[%s1 + $0x410] sm:$0xff]
  %v147 = vld [vmem:[%s1 + $0x418] sm:$0xff]
  %v148 = vld [vmem:[%s1 + $0x420] sm:$0xff]
  %v149 = vld [vmem:[%s1 + $0x428] sm:$0xff]
  %v150 = vld [vmem:[%s1 + $0x430] sm:$0xff]
  %v151 = vld [vmem:[%s1 + $0x438] sm:$0xff]
  %v152 = vld [vmem:[%s1 + $0x440] sm:$0xff]
  %v153 = vld [vmem:[%s1 + $0x448] sm:$0xff]
  %v154 = vld [vmem:[%s1 + $0x450] sm:$0xff]
  %v155 = vld [vmem:[%s1 + $0x458] sm:$0xff]
  %v156 = vld [vmem:[%s1 + $0x460] sm:$0xff]
  %v157 = vld [vmem:[%s1 + $0x468] sm:$0xff]
  %v158 = vld [vmem:[%s1 + $0x470] sm:$0xff]
  %v159 = vld [vmem:[%s1 + $0x478] sm:$0xff]
  %v160 = vld [vmem:[%s1 + $0x480] sm:$0xff]
  %v161 = vld [vmem:[%s1 + $0x488] sm:$0xff]
  %v162 = vld [vmem:[%s1 + $0x490] sm:$0xff]
  %v163 = vld [vmem:[%s1 + $0x498] sm:$0xff]
  %v164 = vld [vmem:[%s1 + $0x4a0] sm:$0xff]
  %v165 = vld [vmem:[%s1 + $0x4a8] sm:$0xff]
  %v166 = vld [vmem:[%s1 + $0x4b0] sm:$0xff]
  %v167 = vld [vmem:[%s1 + $0x4b8] sm:$0xff]
  %v168 = vld [vmem:[%s1 + $0x4c0] sm:$0xff]
  %v169 = vld [vmem:[%s1 + $0x4c8] sm:$0xff]
  %v170 = vld [vmem:[%s1 + $0x4d0] sm:$0xff]
  %v171 = vld [vmem:[%s1 + $0x4d8] sm:$0xff]
  %v172 = vld [vmem:[%s1 + $0x4e0] sm:$0xff]
  %v173 = vld [vmem:[%s1 + $0x4e8] sm:$0xff]
  %v174 = vld [vmem:[%s1 + $0x4f0] sm:$0xff]
  %v175 = vld [vmem:[%s1 + $0x4f8] sm:$0xff]
  %v176 = vld [vmem:[%s1 + $0x500] sm:$0xff]
  %v177 = vld [vmem:[%s1 + $0x508] sm:$0xff]
  %v178 = vld [vmem:[%s1 + $0x510] sm:$0xff]
  %v179 = vld [vmem:[%s1 + $0x518] sm:$0xff]
  %v180 = vld [vmem:[%s1 + $0x520] sm:$0xff]
  %v181 = vld [vmem:[%s1 + $0x528] sm:$0xff]
  %v182 = vld [vmem:[%s1 + $0x530] sm:$0xff]
  %v183 = vld [vmem:[%s1 + $0x538] sm:$0xff]
  %v184 = vld [vmem:[%s1 + $0x540] sm:$0xff]
  %v185 = vld [vmem:[%s1 + $0x548] sm:$0xff]
  %v186 = vld [vmem:[%s1 + $0x550] sm:$0xff]
  %v187 = vld [vmem:[%s1 + $0x558] sm:$0xff]
  %v188 = vld [vmem:[%s1 + $0x560] sm:$0xff]
  %v189 = vld [vmem:[%s1 + $0x568] sm:$0xff]
  %v190 = vld [vmem:[%s1 + $0x570] sm:$0xff]
  %v191 = vld [vmem:[%s1 + $0x578] sm:$0xff]
  %v192 = vld [vmem:[%s1 + $0x580] sm:$0xff]
  %v193 = vld [vmem:[%s1 + $0x588] sm:$0xff]
  %v194 = vld [vmem:[%s1 + $0x590] sm:$0xff]
  %v195 = vld [vmem:[%s1 + $0x598] sm:$0xff]
  %v196 = vld [vmem:[%s1 + $0x5a0] sm:$0xff]
  %v197 = vld [vmem:[%s1 + $0x5a8] sm:$0xff]
  %v198 = vld [vmem:[%s1 + $0x5b0] sm:$0xff]
  %v199 = vld [vmem:[%s1 + $0x5b8] sm:$0xff]
  %v200 = vld [vmem:[%s1 + $0x5c0] sm:$0xff]
  %v201 = vld [vmem:[%s1 + $0x5c8] sm:$0xff]
  %v202 = vld [vmem:[%s1 + $0x5d0] sm:$0xff]
  %v203 = vld [vmem:[%s1 + $0x5d8] sm:$0xff]
  %v204 = vld [vmem:[%s1 + $0x5e0] sm:$0xff]
  %v205 = vld [vmem:[%s1 + $0x5e8] sm:$0xff]
  %v206 = vld [vmem:[%s1 + $0x5f0] sm:$0xff]
  %v207 = vld [vmem:[%s1 + $0x5f8] sm:$0xff]
  %v208 = vld [vmem:[%s2] sm:$0x3f]
  %v210 = vlaneseq
  %v211 = vshrl.u32 %v210, 7
  %v212 = vsub.s32 0, %v211
  %v213 = vrot.slane %v208, %v212
  %v214 = vlaneseq
  %v215 = vshrl.u32 %v214, 7
  %v216 = vsub.s32 1, %v215
  %v217 = vrot.slane %v208, %v216
  %v218 = vlaneseq
  %v219 = vshrl.u32 %v218, 7
  %v220 = vsub.s32 2, %v219
  %v221 = vrot.slane %v208, %v220
  %v222 = vlaneseq
  %v223 = vshrl.u32 %v222, 7
  %v224 = vsub.s32 3, %v223
  %v225 = vrot.slane %v208, %v224
  %v226 = vlaneseq
  %v227 = vshrl.u32 %v226, 7
  %v228 = vsub.s32 4, %v227
  %v229 = vrot.slane %v208, %v228
  %v230 = vlaneseq
  %v231 = vshrl.u32 %v230, 7
  %v232 = vsub.s32 5, %v231
  %v233 = vrot.slane %v208, %v232
  %v242 = vunpack.c.l.b16 %v14
  %v243 = vunpack.c.h.b16 %v14
  %v244 = vunpack.c.l.b16 %v15
  %v245 = vunpack.c.h.b16 %v15
  %v246 = vpack.c.b16 %v242, %v242
  %v247 = vpack.c.b16 %v243, %v243
  %v248 = vpack.c.b16 %v244, %v244
  %v249 = vpack.c.b16 %v245, %v245
  %v446 = vunpack.c.l.b16 %v16
  %v447 = vunpack.c.h.b16 %v16
  %v448 = vunpack.c.l.b16 %v17
  %v449 = vunpack.c.h.b16 %v17
  %v450 = vunpack.c.l.b16 %v18
  %v451 = vunpack.c.h.b16 %v18
  %v452 = vunpack.c.l.b16 %v19
  %v453 = vunpack.c.h.b16 %v19
  %v454 = vunpack.c.l.b16 %v20
  %v455 = vunpack.c.h.b16 %v20
  %v456 = vunpack.c.l.b16 %v21
  %v457 = vunpack.c.h.b16 %v21
  %v458 = vunpack.c.l.b16 %v22
  %v459 = vunpack.c.h.b16 %v22
  %v460 = vunpack.c.l.b16 %v23
  %v461 = vunpack.c.h.b16 %v23
  %v462 = vunpack.c.l.b16 %v24
  %v463 = vunpack.c.h.b16 %v24
  %v464 = vunpack.c.l.b16 %v25
  %v465 = vunpack.c.h.b16 %v25
  %v466 = vunpack.c.l.b16 %v26
  %v467 = vunpack.c.h.b16 %v26
  %v468 = vunpack.c.l.b16 %v27
  %v469 = vunpack.c.h.b16 %v27
  %v470 = vunpack.c.l.b16 %v28
  %v471 = vunpack.c.h.b16 %v28
  %v472 = vunpack.c.l.b16 %v29
  %v473 = vunpack.c.h.b16 %v29
  %v474 = vunpack.c.l.b16 %v30
  %v475 = vunpack.c.h.b16 %v30
  %v476 = vunpack.c.l.b16 %v31
  %v477 = vunpack.c.h.b16 %v31
  %v478 = vunpack.c.l.b16 %v32
  %v479 = vunpack.c.h.b16 %v32
  %v480 = vunpack.c.l.b16 %v33
  %v481 = vunpack.c.h.b16 %v33
  %v482 = vunpack.c.l.b16 %v34
  %v483 = vunpack.c.h.b16 %v34
  %v484 = vunpack.c.l.b16 %v35
  %v485 = vunpack.c.h.b16 %v35
  %v486 = vunpack.c.l.b16 %v36
  %v487 = vunpack.c.h.b16 %v36
  %v488 = vunpack.c.l.b16 %v37
  %v489 = vunpack.c.h.b16 %v37
  %v490 = vunpack.c.l.b16 %v38
  %v491 = vunpack.c.h.b16 %v38
  %v492 = vunpack.c.l.b16 %v39
  %v493 = vunpack.c.h.b16 %v39
  %v494 = vunpack.c.l.b16 %v40
  %v495 = vunpack.c.h.b16 %v40
  %v496 = vunpack.c.l.b16 %v41
  %v497 = vunpack.c.h.b16 %v41
  %v498 = vunpack.c.l.b16 %v42
  %v499 = vunpack.c.h.b16 %v42
  %v500 = vunpack.c.l.b16 %v43
  %v501 = vunpack.c.h.b16 %v43
  %v502 = vunpack.c.l.b16 %v44
  %v503 = vunpack.c.h.b16 %v44
  %v504 = vunpack.c.l.b16 %v45
  %v505 = vunpack.c.h.b16 %v45
  %v506 = vunpack.c.l.b16 %v46
  %v507 = vunpack.c.h.b16 %v46
  %v508 = vunpack.c.l.b16 %v47
  %v509 = vunpack.c.h.b16 %v47
  %v510 = vunpack.c.l.b16 %v48
  %v511 = vunpack.c.h.b16 %v48
  %v512 = vunpack.c.l.b16 %v49
  %v513 = vunpack.c.h.b16 %v49
  %v514 = vunpack.c.l.b16 %v50
  %v515 = vunpack.c.h.b16 %v50
  %v516 = vunpack.c.l.b16 %v51
  %v517 = vunpack.c.h.b16 %v51
  %v518 = vunpack.c.l.b16 %v52
  %v519 = vunpack.c.h.b16 %v52
  %v520 = vunpack.c.l.b16 %v53
  %v521 = vunpack.c.h.b16 %v53
  %v522 = vunpack.c.l.b16 %v54
  %v523 = vunpack.c.h.b16 %v54
  %v524 = vunpack.c.l.b16 %v55
  %v525 = vunpack.c.h.b16 %v55
  %v526 = vunpack.c.l.b16 %v56
  %v527 = vunpack.c.h.b16 %v56
  %v528 = vunpack.c.l.b16 %v57
  %v529 = vunpack.c.h.b16 %v57
  %v530 = vunpack.c.l.b16 %v58
  %v531 = vunpack.c.h.b16 %v58
  %v532 = vunpack.c.l.b16 %v59
  %v533 = vunpack.c.h.b16 %v59
  %v534 = vunpack.c.l.b16 %v60
  %v535 = vunpack.c.h.b16 %v60
  %v536 = vunpack.c.l.b16 %v61
  %v537 = vunpack.c.h.b16 %v61
  %v538 = vunpack.c.l.b16 %v62
  %v539 = vunpack.c.h.b16 %v62
  %v540 = vunpack.c.l.b16 %v63
  %v541 = vunpack.c.h.b16 %v63
  %v542 = vunpack.c.l.b16 %v64
  %v543 = vunpack.c.h.b16 %v64
  %v544 = vunpack.c.l.b16 %v65
  %v545 = vunpack.c.h.b16 %v65
  %v546 = vunpack.c.l.b16 %v66
  %v547 = vunpack.c.h.b16 %v66
  %v548 = vunpack.c.l.b16 %v67
  %v549 = vunpack.c.h.b16 %v67
  %v550 = vunpack.c.l.b16 %v68
  %v551 = vunpack.c.h.b16 %v68
  %v552 = vunpack.c.l.b16 %v69
  %v553 = vunpack.c.h.b16 %v69
  %v554 = vunpack.c.l.b16 %v70
  %v555 = vunpack.c.h.b16 %v70
  %v556 = vunpack.c.l.b16 %v71
  %v557 = vunpack.c.h.b16 %v71
  %v558 = vunpack.c.l.b16 %v72
  %v559 = vunpack.c.h.b16 %v72
  %v560 = vunpack.c.l.b16 %v73
  %v561 = vunpack.c.h.b16 %v73
  %v562 = vunpack.c.l.b16 %v74
  %v563 = vunpack.c.h.b16 %v74
  %v564 = vunpack.c.l.b16 %v75
  %v565 = vunpack.c.h.b16 %v75
  %v566 = vunpack.c.l.b16 %v76
  %v567 = vunpack.c.h.b16 %v76
  %v568 = vunpack.c.l.b16 %v77
  %v569 = vunpack.c.h.b16 %v77
  %v570 = vunpack.c.l.b16 %v78
  %v571 = vunpack.c.h.b16 %v78
  %v572 = vunpack.c.l.b16 %v79
  %v573 = vunpack.c.h.b16 %v79
  %v574 = vunpack.c.l.b16 %v80
  %v575 = vunpack.c.h.b16 %v80
  %v576 = vunpack.c.l.b16 %v81
  %v577 = vunpack.c.h.b16 %v81
  %v578 = vunpack.c.l.b16 %v82
  %v579 = vunpack.c.h.b16 %v82
  %v580 = vunpack.c.l.b16 %v83
  %v581 = vunpack.c.h.b16 %v83
  %v582 = vunpack.c.l.b16 %v84
  %v583 = vunpack.c.h.b16 %v84
  %v584 = vunpack.c.l.b16 %v85
  %v585 = vunpack.c.h.b16 %v85
  %v586 = vunpack.c.l.b16 %v86
  %v587 = vunpack.c.h.b16 %v86
  %v588 = vunpack.c.l.b16 %v87
  %v589 = vunpack.c.h.b16 %v87
  %v590 = vunpack.c.l.b16 %v88
  %v591 = vunpack.c.h.b16 %v88
  %v592 = vunpack.c.l.b16 %v89
  %v593 = vunpack.c.h.b16 %v89
  %v594 = vunpack.c.l.b16 %v90
  %v595 = vunpack.c.h.b16 %v90
  %v596 = vunpack.c.l.b16 %v91
  %v597 = vunpack.c.h.b16 %v91
  %v598 = vunpack.c.l.b16 %v92
  %v599 = vunpack.c.h.b16 %v92
  %v600 = vunpack.c.l.b16 %v93
  %v601 = vunpack.c.h.b16 %v93
  %v602 = vunpack.c.l.b16 %v94
  %v603 = vunpack.c.h.b16 %v94
  %v604 = vunpack.c.l.b16 %v95
  %v605 = vunpack.c.h.b16 %v95
  %v606 = vunpack.c.l.b16 %v96
  %v607 = vunpack.c.h.b16 %v96
  %v608 = vunpack.c.l.b16 %v97
  %v609 = vunpack.c.h.b16 %v97
  %v610 = vunpack.c.l.b16 %v98
  %v611 = vunpack.c.h.b16 %v98
  %v612 = vunpack.c.l.b16 %v99
  %v613 = vunpack.c.h.b16 %v99
  %v614 = vunpack.c.l.b16 %v100
  %v615 = vunpack.c.h.b16 %v100
  %v616 = vunpack.c.l.b16 %v101
  %v617 = vunpack.c.h.b16 %v101
  %v618 = vunpack.c.l.b16 %v102
  %v619 = vunpack.c.h.b16 %v102
  %v620 = vunpack.c.l.b16 %v103
  %v621 = vunpack.c.h.b16 %v103
  %v622 = vunpack.c.l.b16 %v104
  %v623 = vunpack.c.h.b16 %v104
  %v624 = vunpack.c.l.b16 %v105
  %v625 = vunpack.c.h.b16 %v105
  %v626 = vunpack.c.l.b16 %v106
  %v627 = vunpack.c.h.b16 %v106
  %v628 = vunpack.c.l.b16 %v107
  %v629 = vunpack.c.h.b16 %v107
  %v630 = vunpack.c.l.b16 %v108
  %v631 = vunpack.c.h.b16 %v108
  %v632 = vunpack.c.l.b16 %v109
  %v633 = vunpack.c.h.b16 %v109
  %v634 = vunpack.c.l.b16 %v110
  %v635 = vunpack.c.h.b16 %v110
  %v636 = vunpack.c.l.b16 %v111
  %v637 = vunpack.c.h.b16 %v111
  %v638 = vunpack.c.l.b16 %v112
  %v639 = vunpack.c.h.b16 %v112
  %v640 = vunpack.c.l.b16 %v113
  %v641 = vunpack.c.h.b16 %v113
  %v642 = vunpack.c.l.b16 %v114
  %v643 = vunpack.c.h.b16 %v114
  %v644 = vunpack.c.l.b16 %v115
  %v645 = vunpack.c.h.b16 %v115
  %v646 = vunpack.c.l.b16 %v116
  %v647 = vunpack.c.h.b16 %v116
  %v648 = vunpack.c.l.b16 %v117
  %v649 = vunpack.c.h.b16 %v117
  %v650 = vunpack.c.l.b16 %v118
  %v651 = vunpack.c.h.b16 %v118
  %v652 = vunpack.c.l.b16 %v119
  %v653 = vunpack.c.h.b16 %v119
  %v654 = vunpack.c.l.b16 %v120
  %v655 = vunpack.c.h.b16 %v120
  %v656 = vunpack.c.l.b16 %v121
  %v657 = vunpack.c.h.b16 %v121
  %v658 = vunpack.c.l.b16 %v122
  %v659 = vunpack.c.h.b16 %v122
  %v660 = vunpack.c.l.b16 %v123
  %v661 = vunpack.c.h.b16 %v123
  %v662 = vunpack.c.l.b16 %v124
  %v663 = vunpack.c.h.b16 %v124
  %v664 = vunpack.c.l.b16 %v125
  %v665 = vunpack.c.h.b16 %v125
  %v666 = vunpack.c.l.b16 %v126
  %v667 = vunpack.c.h.b16 %v126
  %v668 = vunpack.c.l.b16 %v127
  %v669 = vunpack.c.h.b16 %v127
  %v670 = vunpack.c.l.b16 %v128
  %v671 = vunpack.c.h.b16 %v128
  %v672 = vunpack.c.l.b16 %v129
  %v673 = vunpack.c.h.b16 %v129
  %v674 = vunpack.c.l.b16 %v130
  %v675 = vunpack.c.h.b16 %v130
  %v676 = vunpack.c.l.b16 %v131
  %v677 = vunpack.c.h.b16 %v131
  %v678 = vunpack.c.l.b16 %v132
  %v679 = vunpack.c.h.b16 %v132
  %v680 = vunpack.c.l.b16 %v133
  %v681 = vunpack.c.h.b16 %v133
  %v682 = vunpack.c.l.b16 %v134
  %v683 = vunpack.c.h.b16 %v134
  %v684 = vunpack.c.l.b16 %v135
  %v685 = vunpack.c.h.b16 %v135
  %v686 = vunpack.c.l.b16 %v136
  %v687 = vunpack.c.h.b16 %v136
  %v688 = vunpack.c.l.b16 %v137
  %v689 = vunpack.c.h.b16 %v137
  %v690 = vunpack.c.l.b16 %v138
  %v691 = vunpack.c.h.b16 %v138
  %v692 = vunpack.c.l.b16 %v139
  %v693 = vunpack.c.h.b16 %v139
  %v694 = vunpack.c.l.b16 %v140
  %v695 = vunpack.c.h.b16 %v140
  %v696 = vunpack.c.l.b16 %v141
  %v697 = vunpack.c.h.b16 %v141
  %v698 = vunpack.c.l.b16 %v142
  %v699 = vunpack.c.h.b16 %v142
  %v700 = vunpack.c.l.b16 %v143
  %v701 = vunpack.c.h.b16 %v143
  %v702 = vunpack.c.l.b16 %v144
  %v703 = vunpack.c.h.b16 %v144
  %v704 = vunpack.c.l.b16 %v145
  %v705 = vunpack.c.h.b16 %v145
  %v706 = vunpack.c.l.b16 %v146
  %v707 = vunpack.c.h.b16 %v146
  %v708 = vunpack.c.l.b16 %v147
  %v709 = vunpack.c.h.b16 %v147
  %v710 = vunpack.c.l.b16 %v148
  %v711 = vunpack.c.h.b16 %v148
  %v712 = vunpack.c.l.b16 %v149
  %v713 = vunpack.c.h.b16 %v149
  %v714 = vunpack.c.l.b16 %v150
  %v715 = vunpack.c.h.b16 %v150
  %v716 = vunpack.c.l.b16 %v151
  %v717 = vunpack.c.h.b16 %v151
  %v718 = vunpack.c.l.b16 %v152
  %v719 = vunpack.c.h.b16 %v152
  %v720 = vunpack.c.l.b16 %v153
  %v721 = vunpack.c.h.b16 %v153
  %v722 = vunpack.c.l.b16 %v154
  %v723 = vunpack.c.h.b16 %v154
  %v724 = vunpack.c.l.b16 %v155
  %v725 = vunpack.c.h.b16 %v155
  %v726 = vunpack.c.l.b16 %v156
  %v727 = vunpack.c.h.b16 %v156
  %v728 = vunpack.c.l.b16 %v157
  %v729 = vunpack.c.h.b16 %v157
  %v730 = vunpack.c.l.b16 %v158
  %v731 = vunpack.c.h.b16 %v158
  %v732 = vunpack.c.l.b16 %v159
  %v733 = vunpack.c.h.b16 %v159
  %v734 = vunpack.c.l.b16 %v160
  %v735 = vunpack.c.h.b16 %v160
  %v736 = vunpack.c.l.b16 %v161
  %v737 = vunpack.c.h.b16 %v161
  %v738 = vunpack.c.l.b16 %v162
  %v739 = vunpack.c.h.b16 %v162
  %v740 = vunpack.c.l.b16 %v163
  %v741 = vunpack.c.h.b16 %v163
  %v742 = vunpack.c.l.b16 %v164
  %v743 = vunpack.c.h.b16 %v164
  %v744 = vunpack.c.l.b16 %v165
  %v745 = vunpack.c.h.b16 %v165
  %v746 = vunpack.c.l.b16 %v166
  %v747 = vunpack.c.h.b16 %v166
  %v748 = vunpack.c.l.b16 %v167
  %v749 = vunpack.c.h.b16 %v167
  %v750 = vunpack.c.l.b16 %v168
  %v751 = vunpack.c.h.b16 %v168
  %v752 = vunpack.c.l.b16 %v169
  %v753 = vunpack.c.h.b16 %v169
  %v754 = vunpack.c.l.b16 %v170
  %v755 = vunpack.c.h.b16 %v170
  %v756 = vunpack.c.l.b16 %v171
  %v757 = vunpack.c.h.b16 %v171
  %v758 = vunpack.c.l.b16 %v172
  %v759 = vunpack.c.h.b16 %v172
  %v760 = vunpack.c.l.b16 %v173
  %v761 = vunpack.c.h.b16 %v173
  %v762 = vunpack.c.l.b16 %v174
  %v763 = vunpack.c.h.b16 %v174
  %v764 = vunpack.c.l.b16 %v175
  %v765 = vunpack.c.h.b16 %v175
  %v766 = vunpack.c.l.b16 %v176
  %v767 = vunpack.c.h.b16 %v176
  %v768 = vunpack.c.l.b16 %v177
  %v769 = vunpack.c.h.b16 %v177
  %v770 = vunpack.c.l.b16 %v178
  %v771 = vunpack.c.h.b16 %v178
  %v772 = vunpack.c.l.b16 %v179
  %v773 = vunpack.c.h.b16 %v179
  %v774 = vunpack.c.l.b16 %v180
  %v775 = vunpack.c.h.b16 %v180
  %v776 = vunpack.c.l.b16 %v181
  %v777 = vunpack.c.h.b16 %v181
  %v778 = vunpack.c.l.b16 %v182
  %v779 = vunpack.c.h.b16 %v182
  %v780 = vunpack.c.l.b16 %v183
  %v781 = vunpack.c.h.b16 %v183
  %v782 = vunpack.c.l.b16 %v184
  %v783 = vunpack.c.h.b16 %v184
  %v784 = vunpack.c.l.b16 %v185
  %v785 = vunpack.c.h.b16 %v185
  %v786 = vunpack.c.l.b16 %v186
  %v787 = vunpack.c.h.b16 %v186
  %v788 = vunpack.c.l.b16 %v187
  %v789 = vunpack.c.h.b16 %v187
  %v790 = vunpack.c.l.b16 %v188
  %v791 = vunpack.c.h.b16 %v188
  %v792 = vunpack.c.l.b16 %v189
  %v793 = vunpack.c.h.b16 %v189
  %v794 = vunpack.c.l.b16 %v190
  %v795 = vunpack.c.h.b16 %v190
  %v796 = vunpack.c.l.b16 %v191
  %v797 = vunpack.c.h.b16 %v191
  %v798 = vunpack.c.l.b16 %v192
  %v799 = vunpack.c.h.b16 %v192
  %v800 = vunpack.c.l.b16 %v193
  %v801 = vunpack.c.h.b16 %v193
  %v802 = vunpack.c.l.b16 %v194
  %v803 = vunpack.c.h.b16 %v194
  %v804 = vunpack.c.l.b16 %v195
  %v805 = vunpack.c.h.b16 %v195
  %v806 = vunpack.c.l.b16 %v196
  %v807 = vunpack.c.h.b16 %v196
  %v808 = vunpack.c.l.b16 %v197
  %v809 = vunpack.c.h.b16 %v197
  %v810 = vunpack.c.l.b16 %v198
  %v811 = vunpack.c.h.b16 %v198
  %v812 = vunpack.c.l.b16 %v199
  %v813 = vunpack.c.h.b16 %v199
  %v814 = vunpack.c.l.b16 %v200
  %v815 = vunpack.c.h.b16 %v200
  %v816 = vunpack.c.l.b16 %v201
  %v817 = vunpack.c.h.b16 %v201
  %v818 = vunpack.c.l.b16 %v202
  %v819 = vunpack.c.h.b16 %v202
  %v820 = vunpack.c.l.b16 %v203
  %v821 = vunpack.c.h.b16 %v203
  %v822 = vunpack.c.l.b16 %v204
  %v823 = vunpack.c.h.b16 %v204
  %v824 = vunpack.c.l.b16 %v205
  %v825 = vunpack.c.h.b16 %v205
  %v826 = vunpack.c.l.b16 %v206
  %v827 = vunpack.c.h.b16 %v206
  %v828 = vunpack.c.l.b16 %v207
  %v829 = vunpack.c.h.b16 %v207
  %v830 = vpack.c.b16 %v452, %v446
  %v831 = vpack.c.b16 %v453, %v447
  %v832 = vpack.c.b16 %v454, %v448
  %v833 = vpack.c.b16 %v455, %v449
  %v834 = vpack.c.b16 %v456, %v450
  %v835 = vpack.c.b16 %v457, %v451
  %v836 = vpack.c.b16 %v464, %v458
  %v837 = vpack.c.b16 %v465, %v459
  %v838 = vpack.c.b16 %v466, %v460
  %v839 = vpack.c.b16 %v467, %v461
  %v840 = vpack.c.b16 %v468, %v462
  %v841 = vpack.c.b16 %v469, %v463
  %v842 = vpack.c.b16 %v476, %v470
  %v843 = vpack.c.b16 %v477, %v471
  %v844 = vpack.c.b16 %v478, %v472
  %v845 = vpack.c.b16 %v479, %v473
  %v846 = vpack.c.b16 %v480, %v474
  %v847 = vpack.c.b16 %v481, %v475
  %v848 = vpack.c.b16 %v488, %v482
  %v849 = vpack.c.b16 %v489, %v483
  %v850 = vpack.c.b16 %v490, %v484
  %v851 = vpack.c.b16 %v491, %v485
  %v852 = vpack.c.b16 %v492, %v486
  %v853 = vpack.c.b16 %v493, %v487
  %v854 = vpack.c.b16 %v500, %v494
  %v855 = vpack.c.b16 %v501, %v495
  %v856 = vpack.c.b16 %v502, %v496
  %v857 = vpack.c.b16 %v503, %v497
  %v858 = vpack.c.b16 %v504, %v498
  %v859 = vpack.c.b16 %v505, %v499
  %v860 = vpack.c.b16 %v512, %v506
  %v861 = vpack.c.b16 %v513, %v507
  %v862 = vpack.c.b16 %v514, %v508
  %v863 = vpack.c.b16 %v515, %v509
  %v864 = vpack.c.b16 %v516, %v510
  %v865 = vpack.c.b16 %v517, %v511
  %v866 = vpack.c.b16 %v524, %v518
  %v867 = vpack.c.b16 %v525, %v519
  %v868 = vpack.c.b16 %v526, %v520
  %v869 = vpack.c.b16 %v527, %v521
  %v870 = vpack.c.b16 %v528, %v522
  %v871 = vpack.c.b16 %v529, %v523
  %v872 = vpack.c.b16 %v536, %v530
  %v873 = vpack.c.b16 %v537, %v531
  %v874 = vpack.c.b16 %v538, %v532
  %v875 = vpack.c.b16 %v539, %v533
  %v876 = vpack.c.b16 %v540, %v534
  %v877 = vpack.c.b16 %v541, %v535
  %v878 = vpack.c.b16 %v548, %v542
  %v879 = vpack.c.b16 %v549, %v543
  %v880 = vpack.c.b16 %v550, %v544
  %v881 = vpack.c.b16 %v551, %v545
  %v882 = vpack.c.b16 %v552, %v546
  %v883 = vpack.c.b16 %v553, %v547
  %v884 = vpack.c.b16 %v560, %v554
  %v885 = vpack.c.b16 %v561, %v555
  %v886 = vpack.c.b16 %v562, %v556
  %v887 = vpack.c.b16 %v563, %v557
  %v888 = vpack.c.b16 %v564, %v558
  %v889 = vpack.c.b16 %v565, %v559
  %v890 = vpack.c.b16 %v572, %v566
  %v891 = vpack.c.b16 %v573, %v567
  %v892 = vpack.c.b16 %v574, %v568
  %v893 = vpack.c.b16 %v575, %v569
  %v894 = vpack.c.b16 %v576, %v570
  %v895 = vpack.c.b16 %v577, %v571
  %v896 = vpack.c.b16 %v584, %v578
  %v897 = vpack.c.b16 %v585, %v579
  %v898 = vpack.c.b16 %v586, %v580
  %v899 = vpack.c.b16 %v587, %v581
  %v900 = vpack.c.b16 %v588, %v582
  %v901 = vpack.c.b16 %v589, %v583
  %v902 = vpack.c.b16 %v596, %v590
  %v903 = vpack.c.b16 %v597, %v591
  %v904 = vpack.c.b16 %v598, %v592
  %v905 = vpack.c.b16 %v599, %v593
  %v906 = vpack.c.b16 %v600, %v594
  %v907 = vpack.c.b16 %v601, %v595
  %v908 = vpack.c.b16 %v608, %v602
  %v909 = vpack.c.b16 %v609, %v603
  %v910 = vpack.c.b16 %v610, %v604
  %v911 = vpack.c.b16 %v611, %v605
  %v912 = vpack.c.b16 %v612, %v606
  %v913 = vpack.c.b16 %v613, %v607
  %v914 = vpack.c.b16 %v620, %v614
  %v915 = vpack.c.b16 %v621, %v615
  %v916 = vpack.c.b16 %v622, %v616
  %v917 = vpack.c.b16 %v623, %v617
  %v918 = vpack.c.b16 %v624, %v618
  %v919 = vpack.c.b16 %v625, %v619
  %v920 = vpack.c.b16 %v632, %v626
  %v921 = vpack.c.b16 %v633, %v627
  %v922 = vpack.c.b16 %v634, %v628
  %v923 = vpack.c.b16 %v635, %v629
  %v924 = vpack.c.b16 %v636, %v630
  %v925 = vpack.c.b16 %v637, %v631
  %v926 = vpack.c.b16 %v644, %v638
  %v927 = vpack.c.b16 %v645, %v639
  %v928 = vpack.c.b16 %v646, %v640
  %v929 = vpack.c.b16 %v647, %v641
  %v930 = vpack.c.b16 %v648, %v642
  %v931 = vpack.c.b16 %v649, %v643
  %v932 = vpack.c.b16 %v656, %v650
  %v933 = vpack.c.b16 %v657, %v651
  %v934 = vpack.c.b16 %v658, %v652
  %v935 = vpack.c.b16 %v659, %v653
  %v936 = vpack.c.b16 %v660, %v654
  %v937 = vpack.c.b16 %v661, %v655
  %v938 = vpack.c.b16 %v668, %v662
  %v939 = vpack.c.b16 %v669, %v663
  %v940 = vpack.c.b16 %v670, %v664
  %v941 = vpack.c.b16 %v671, %v665
  %v942 = vpack.c.b16 %v672, %v666
  %v943 = vpack.c.b16 %v673, %v667
  %v944 = vpack.c.b16 %v680, %v674
  %v945 = vpack.c.b16 %v681, %v675
  %v946 = vpack.c.b16 %v682, %v676
  %v947 = vpack.c.b16 %v683, %v677
  %v948 = vpack.c.b16 %v684, %v678
  %v949 = vpack.c.b16 %v685, %v679
  %v950 = vpack.c.b16 %v692, %v686
  %v951 = vpack.c.b16 %v693, %v687
  %v952 = vpack.c.b16 %v694, %v688
  %v953 = vpack.c.b16 %v695, %v689
  %v954 = vpack.c.b16 %v696, %v690
  %v955 = vpack.c.b16 %v697, %v691
  %v956 = vpack.c.b16 %v704, %v698
  %v957 = vpack.c.b16 %v705, %v699
  %v958 = vpack.c.b16 %v706, %v700
  %v959 = vpack.c.b16 %v707, %v701
  %v960 = vpack.c.b16 %v708, %v702
  %v961 = vpack.c.b16 %v709, %v703
  %v962 = vpack.c.b16 %v716, %v710
  %v963 = vpack.c.b16 %v717, %v711
  %v964 = vpack.c.b16 %v718, %v712
  %v965 = vpack.c.b16 %v719, %v713
  %v966 = vpack.c.b16 %v720, %v714
  %v967 = vpack.c.b16 %v721, %v715
  %v968 = vpack.c.b16 %v728, %v722
  %v969 = vpack.c.b16 %v729, %v723
  %v970 = vpack.c.b16 %v730, %v724
  %v971 = vpack.c.b16 %v731, %v725
  %v972 = vpack.c.b16 %v732, %v726
  %v973 = vpack.c.b16 %v733, %v727
  %v974 = vpack.c.b16 %v740, %v734
  %v975 = vpack.c.b16 %v741, %v735
  %v976 = vpack.c.b16 %v742, %v736
  %v977 = vpack.c.b16 %v743, %v737
  %v978 = vpack.c.b16 %v744, %v738
  %v979 = vpack.c.b16 %v745, %v739
  %v980 = vpack.c.b16 %v752, %v746
  %v981 = vpack.c.b16 %v753, %v747
  %v982 = vpack.c.b16 %v754, %v748
  %v983 = vpack.c.b16 %v755, %v749
  %v984 = vpack.c.b16 %v756, %v750
  %v985 = vpack.c.b16 %v757, %v751
  %v986 = vpack.c.b16 %v764, %v758
  %v987 = vpack.c.b16 %v765, %v759
  %v988 = vpack.c.b16 %v766, %v760
  %v989 = vpack.c.b16 %v767, %v761
  %v990 = vpack.c.b16 %v768, %v762
  %v991 = vpack.c.b16 %v769, %v763
  %v992 = vpack.c.b16 %v776, %v770
  %v993 = vpack.c.b16 %v777, %v771
  %v994 = vpack.c.b16 %v778, %v772
  %v995 = vpack.c.b16 %v779, %v773
  %v996 = vpack.c.b16 %v780, %v774
  %v997 = vpack.c.b16 %v781, %v775
  %v998 = vpack.c.b16 %v788, %v782
  %v999 = vpack.c.b16 %v789, %v783
  %v1000 = vpack.c.b16 %v790, %v784
  %v1001 = vpack.c.b16 %v791, %v785
  %v1002 = vpack.c.b16 %v792, %v786
  %v1003 = vpack.c.b16 %v793, %v787
  %v1004 = vpack.c.b16 %v800, %v794
  %v1005 = vpack.c.b16 %v801, %v795
  %v1006 = vpack.c.b16 %v802, %v796
  %v1007 = vpack.c.b16 %v803, %v797
  %v1008 = vpack.c.b16 %v804, %v798
  %v1009 = vpack.c.b16 %v805, %v799
  %v1010 = vpack.c.b16 %v812, %v806
  %v1011 = vpack.c.b16 %v813, %v807
  %v1012 = vpack.c.b16 %v814, %v808
  %v1013 = vpack.c.b16 %v815, %v809
  %v1014 = vpack.c.b16 %v816, %v810
  %v1015 = vpack.c.b16 %v817, %v811
  %v1016 = vpack.c.b16 %v824, %v818
  %v1017 = vpack.c.b16 %v825, %v819
  %v1018 = vpack.c.b16 %v826, %v820
  %v1019 = vpack.c.b16 %v827, %v821
  %v1020 = vpack.c.b16 %v828, %v822
  %v1021 = vpack.c.b16 %v829, %v823
  %1214 = vmatprep.subr.bf16.mxu0 %v831
  %1215 = vmatpush1.bf16.msra.mxu0 %v830
  %1216 = vmatprep.subr.bf16.mxu0 %v837
  %1217 = vmatpush1.bf16.msra.mxu0 %v836
  %1218 = vmatprep.subr.bf16.mxu0 %v843
  %1219 = vmatpush1.bf16.msra.mxu0 %v842
  %1220 = vmatprep.subr.bf16.mxu0 %v849
  %1221 = vmatpush1.bf16.msra.mxu0 %v848
  %1222 = vmatprep.subr.bf16.mxu0 %v855
  %1223 = vmatpush1.bf16.msra.mxu0 %v854
  %1224 = vmatprep.subr.bf16.mxu0 %v861
  %1225 = vmatpush1.bf16.msra.mxu0 %v860
  %1226 = vmatprep.subr.bf16.mxu0 %v867
  %1227 = vmatpush1.bf16.msra.mxu0 %v866
  %1228 = vmatprep.subr.bf16.mxu0 %v873
  %1229 = vmatpush1.bf16.msra.mxu0 %v872
  %1230 = vmatprep.subr.bf16.mxu0 %v879
  %1231 = vmatpush1.bf16.msra.mxu0 %v878
  %1232 = vmatprep.subr.bf16.mxu0 %v885
  %1233 = vmatpush1.bf16.msra.mxu0 %v884
  %1234 = vmatprep.subr.bf16.mxu0 %v891
  %1235 = vmatpush1.bf16.msra.mxu0 %v890
  %1236 = vmatprep.subr.bf16.mxu0 %v897
  %1237 = vmatpush1.bf16.msra.mxu0 %v896
  %1238 = vmatprep.subr.bf16.mxu0 %v903
  %1239 = vmatpush1.bf16.msra.mxu0 %v902
  %1240 = vmatprep.subr.bf16.mxu0 %v909
  %1241 = vmatpush1.bf16.msra.mxu0 %v908
  %1242 = vmatprep.subr.bf16.mxu0 %v915
  %1243 = vmatpush1.bf16.msra.mxu0 %v914
  %1244 = vmatprep.subr.bf16.mxu0 %v921
  %1245 = vmatpush1.bf16.msra.mxu0 %v920
  %1246 = vmatprep.mubr.bf16.mxu0 %v247
  %1247 = vmatmul.mubr.bf16.gmra.mrb[0].mxu0 %v246
  %v1248 = vpop.f32.mrb[0].mxu0
  %v1249 = vadd.f32 %v213, %v1248
  %v1250 = vpop.f32.mrb[0].mxu0
  %v1251 = vadd.f32 %v217, %v1250
  %v1252 = vpop.f32.mrb[0].mxu0
  %v1253 = vpop.f32.mrb[0].mxu0
  %1254 = vdwg.mxu0
  %1255 = vmatprep.subr.bf16.mxu0 %v927
  %1256 = vmatpush1.bf16.msra.mxu0 %v926
  %1257 = vmatprep.subr.bf16.mxu0 %v933
  %1258 = vmatpush1.bf16.msra.mxu0 %v932
  %1259 = vmatprep.subr.bf16.mxu0 %v939
  %1260 = vmatpush1.bf16.msra.mxu0 %v938
  %1261 = vmatprep.subr.bf16.mxu0 %v945
  %1262 = vmatpush1.bf16.msra.mxu0 %v944
  %1263 = vmatprep.subr.bf16.mxu0 %v951
  %1264 = vmatpush1.bf16.msra.mxu0 %v950
  %1265 = vmatprep.subr.bf16.mxu0 %v957
  %1266 = vmatpush1.bf16.msra.mxu0 %v956
  %1267 = vmatprep.subr.bf16.mxu0 %v963
  %1268 = vmatpush1.bf16.msra.mxu0 %v962
  %1269 = vmatprep.subr.bf16.mxu0 %v969
  %1270 = vmatpush1.bf16.msra.mxu0 %v968
  %1271 = vmatprep.subr.bf16.mxu0 %v975
  %1272 = vmatpush1.bf16.msra.mxu0 %v974
  %1273 = vmatprep.subr.bf16.mxu0 %v981
  %1274 = vmatpush1.bf16.msra.mxu0 %v980
  %1275 = vmatprep.subr.bf16.mxu0 %v987
  %1276 = vmatpush1.bf16.msra.mxu0 %v986
  %1277 = vmatprep.subr.bf16.mxu0 %v993
  %1278 = vmatpush1.bf16.msra.mxu0 %v992
  %1279 = vmatprep.subr.bf16.mxu0 %v999
  %1280 = vmatpush1.bf16.msra.mxu0 %v998
  %1281 = vmatprep.subr.bf16.mxu0 %v1005
  %1282 = vmatpush1.bf16.msra.mxu0 %v1004
  %1283 = vmatprep.subr.bf16.mxu0 %v1011
  %1284 = vmatpush1.bf16.msra.mxu0 %v1010
  %1285 = vmatprep.subr.bf16.mxu0 %v1017
  %1286 = vmatpush1.bf16.msra.mxu0 %v1016
  %1287 = vmatprep.mubr.bf16.mxu0 %v249
  %1288 = vmatmul.mubr.bf16.gmra.mrb[0].mxu0 %v248
  %v1289 = vpop.f32.mrb[0].mxu0
  %v1290 = vadd.f32 %v1249, %v1289
  %v1291 = vpop.f32.mrb[0].mxu0
  %v1292 = vadd.f32 %v1251, %v1291
  %v1293 = vpop.f32.mrb[0].mxu0
  %v1294 = vpop.f32.mrb[0].mxu0
  %1295 = vdwg.mxu0
  %1296 = vmatprep.subr.bf16.mxu0 %v833
  %1297 = vmatpush1.bf16.msra.mxu0 %v832
  %1298 = vmatprep.subr.bf16.mxu0 %v839
  %1299 = vmatpush1.bf16.msra.mxu0 %v838
  %1300 = vmatprep.subr.bf16.mxu0 %v845
  %1301 = vmatpush1.bf16.msra.mxu0 %v844
  %1302 = vmatprep.subr.bf16.mxu0 %v851
  %1303 = vmatpush1.bf16.msra.mxu0 %v850
  %1304 = vmatprep.subr.bf16.mxu0 %v857
  %1305 = vmatpush1.bf16.msra.mxu0 %v856
  %1306 = vmatprep.subr.bf16.mxu0 %v863
  %1307 = vmatpush1.bf16.msra.mxu0 %v862
  %1308 = vmatprep.subr.bf16.mxu0 %v869
  %1309 = vmatpush1.bf16.msra.mxu0 %v868
  %1310 = vmatprep.subr.bf16.mxu0 %v875
  %1311 = vmatpush1.bf16.msra.mxu0 %v874
  %1312 = vmatprep.subr.bf16.mxu0 %v881
  %1313 = vmatpush1.bf16.msra.mxu0 %v880
  %1314 = vmatprep.subr.bf16.mxu0 %v887
  %1315 = vmatpush1.bf16.msra.mxu0 %v886
  %1316 = vmatprep.subr.bf16.mxu0 %v893
  %1317 = vmatpush1.bf16.msra.mxu0 %v892
  %1318 = vmatprep.subr.bf16.mxu0 %v899
  %1319 = vmatpush1.bf16.msra.mxu0 %v898
  %1320 = vmatprep.subr.bf16.mxu0 %v905
  %1321 = vmatpush1.bf16.msra.mxu0 %v904
  %1322 = vmatprep.subr.bf16.mxu0 %v911
  %1323 = vmatpush1.bf16.msra.mxu0 %v910
  %1324 = vmatprep.subr.bf16.mxu0 %v917
  %1325 = vmatpush1.bf16.msra.mxu0 %v916
  %1326 = vmatprep.subr.bf16.mxu0 %v923
  %1327 = vmatpush1.bf16.msra.mxu0 %v922
  %1328 = vmatprep.mubr.bf16.mxu0 %v247
  %1329 = vmatmul.mubr.bf16.gmra.mrb[0].mxu0 %v246
  %v1330 = vpop.f32.mrb[0].mxu0
  %v1331 = vadd.f32 %v221, %v1330
  %v1332 = vpop.f32.mrb[0].mxu0
  %v1333 = vadd.f32 %v225, %v1332
  %v1334 = vpop.f32.mrb[0].mxu0
  %v1335 = vpop.f32.mrb[0].mxu0
  %1336 = vdwg.mxu0
  %1337 = vmatprep.subr.bf16.mxu0 %v929
  %1338 = vmatpush1.bf16.msra.mxu0 %v928
  %1339 = vmatprep.subr.bf16.mxu0 %v935
  %1340 = vmatpush1.bf16.msra.mxu0 %v934
  %1341 = vmatprep.subr.bf16.mxu0 %v941
  %1342 = vmatpush1.bf16.msra.mxu0 %v940
  %1343 = vmatprep.subr.bf16.mxu0 %v947
  %1344 = vmatpush1.bf16.msra.mxu0 %v946
  %1345 = vmatprep.subr.bf16.mxu0 %v953
  %1346 = vmatpush1.bf16.msra.mxu0 %v952
  %1347 = vmatprep.subr.bf16.mxu0 %v959
  %1348 = vmatpush1.bf16.msra.mxu0 %v958
  %1349 = vmatprep.subr.bf16.mxu0 %v965
  %1350 = vmatpush1.bf16.msra.mxu0 %v964
  %1351 = vmatprep.subr.bf16.mxu0 %v971
  %1352 = vmatpush1.bf16.msra.mxu0 %v970
  %1353 = vmatprep.subr.bf16.mxu0 %v977
  %1354 = vmatpush1.bf16.msra.mxu0 %v976
  %1355 = vmatprep.subr.bf16.mxu0 %v983
  %1356 = vmatpush1.bf16.msra.mxu0 %v982
  %1357 = vmatprep.subr.bf16.mxu0 %v989
  %1358 = vmatpush1.bf16.msra.mxu0 %v988
  %1359 = vmatprep.subr.bf16.mxu0 %v995
  %1360 = vmatpush1.bf16.msra.mxu0 %v994
  %1361 = vmatprep.subr.bf16.mxu0 %v1001
  %1362 = vmatpush1.bf16.msra.mxu0 %v1000
  %1363 = vmatprep.subr.bf16.mxu0 %v1007
  %1364 = vmatpush1.bf16.msra.mxu0 %v1006
  %1365 = vmatprep.subr.bf16.mxu0 %v1013
  %1366 = vmatpush1.bf16.msra.mxu0 %v1012
  %1367 = vmatprep.subr.bf16.mxu0 %v1019
  %1368 = vmatpush1.bf16.msra.mxu0 %v1018
  %1369 = vmatprep.mubr.bf16.mxu0 %v249
  %1370 = vmatmul.mubr.bf16.gmra.mrb[0].mxu0 %v248
  %v1371 = vpop.f32.mrb[0].mxu0
  %v1372 = vadd.f32 %v1331, %v1371
  %v1373 = vpop.f32.mrb[0].mxu0
  %v1374 = vadd.f32 %v1333, %v1373
  %v1375 = vpop.f32.mrb[0].mxu0
  %v1376 = vpop.f32.mrb[0].mxu0
  %1377 = vdwg.mxu0
  %1378 = vmatprep.subr.bf16.mxu0 %v835
  %1379 = vmatpush1.bf16.msra.mxu0 %v834
  %1380 = vmatprep.subr.bf16.mxu0 %v841
  %1381 = vmatpush1.bf16.msra.mxu0 %v840
  %1382 = vmatprep.subr.bf16.mxu0 %v847
  %1383 = vmatpush1.bf16.msra.mxu0 %v846
  %1384 = vmatprep.subr.bf16.mxu0 %v853
  %1385 = vmatpush1.bf16.msra.mxu0 %v852
  %1386 = vmatprep.subr.bf16.mxu0 %v859
  %1387 = vmatpush1.bf16.msra.mxu0 %v858
  %1388 = vmatprep.subr.bf16.mxu0 %v865
  %1389 = vmatpush1.bf16.msra.mxu0 %v864
  %1390 = vmatprep.subr.bf16.mxu0 %v871
  %1391 = vmatpush1.bf16.msra.mxu0 %v870
  %1392 = vmatprep.subr.bf16.mxu0 %v877
  %1393 = vmatpush1.bf16.msra.mxu0 %v876
  %1394 = vmatprep.subr.bf16.mxu0 %v883
  %1395 = vmatpush1.bf16.msra.mxu0 %v882
  %1396 = vmatprep.subr.bf16.mxu0 %v889
  %1397 = vmatpush1.bf16.msra.mxu0 %v888
  %1398 = vmatprep.subr.bf16.mxu0 %v895
  %1399 = vmatpush1.bf16.msra.mxu0 %v894
  %1400 = vmatprep.subr.bf16.mxu0 %v901
  %1401 = vmatpush1.bf16.msra.mxu0 %v900
  %1402 = vmatprep.subr.bf16.mxu0 %v907
  %1403 = vmatpush1.bf16.msra.mxu0 %v906
  %1404 = vmatprep.subr.bf16.mxu0 %v913
  %1405 = vmatpush1.bf16.msra.mxu0 %v912
  %1406 = vmatprep.subr.bf16.mxu0 %v919
  %1407 = vmatpush1.bf16.msra.mxu0 %v918
  %1408 = vmatprep.subr.bf16.mxu0 %v925
  %1409 = vmatpush1.bf16.msra.mxu0 %v924
  %1410 = vmatprep.mubr.bf16.mxu0 %v247
  %1411 = vmatmul.mubr.bf16.gmra.mrb[0].mxu0 %v246
  %v1412 = vpop.f32.mrb[0].mxu0
  %v1413 = vadd.f32 %v229, %v1412
  %v1414 = vpop.f32.mrb[0].mxu0
  %v1415 = vadd.f32 %v233, %v1414
  %v1416 = vpop.f32.mrb[0].mxu0
  %v1417 = vpop.f32.mrb[0].mxu0
  %1418 = vdwg.mxu0
  %1419 = vmatprep.subr.bf16.mxu0 %v931
  %1420 = vmatpush1.bf16.msra.mxu0 %v930
  %1421 = vmatprep.subr.bf16.mxu0 %v937
  %1422 = vmatpush1.bf16.msra.mxu0 %v936
  %1423 = vmatprep.subr.bf16.mxu0 %v943
  %1424 = vmatpush1.bf16.msra.mxu0 %v942
  %1425 = vmatprep.subr.bf16.mxu0 %v949
  %1426 = vmatpush1.bf16.msra.mxu0 %v948
  %1427 = vmatprep.subr.bf16.mxu0 %v955
  %1428 = vmatpush1.bf16.msra.mxu0 %v954
  %1429 = vmatprep.subr.bf16.mxu0 %v961
  %1430 = vmatpush1.bf16.msra.mxu0 %v960
  %1431 = vmatprep.subr.bf16.mxu0 %v967
  %1432 = vmatpush1.bf16.msra.mxu0 %v966
  %1433 = vmatprep.subr.bf16.mxu0 %v973
  %1434 = vmatpush1.bf16.msra.mxu0 %v972
  %1435 = vmatprep.subr.bf16.mxu0 %v979
  %1436 = vmatpush1.bf16.msra.mxu0 %v978
  %1437 = vmatprep.subr.bf16.mxu0 %v985
  %1438 = vmatpush1.bf16.msra.mxu0 %v984
  %1439 = vmatprep.subr.bf16.mxu0 %v991
  %1440 = vmatpush1.bf16.msra.mxu0 %v990
  %1441 = vmatprep.subr.bf16.mxu0 %v997
  %1442 = vmatpush1.bf16.msra.mxu0 %v996
  %1443 = vmatprep.subr.bf16.mxu0 %v1003
  %1444 = vmatpush1.bf16.msra.mxu0 %v1002
  %1445 = vmatprep.subr.bf16.mxu0 %v1009
  %1446 = vmatpush1.bf16.msra.mxu0 %v1008
  %1447 = vmatprep.subr.bf16.mxu0 %v1015
  %1448 = vmatpush1.bf16.msra.mxu0 %v1014
  %1449 = vmatprep.subr.bf16.mxu0 %v1021
  %1450 = vmatpush1.bf16.msra.mxu0 %v1020
  %1451 = vmatprep.mubr.bf16.mxu0 %v249
  %1452 = vmatmul.mubr.bf16.gmra.mrb[0].mxu0 %v248
  %v1453 = vpop.f32.mrb[0].mxu0
  %v1454 = vadd.f32 %v1413, %v1453
  %v1455 = vpop.f32.mrb[0].mxu0
  %v1456 = vadd.f32 %v1415, %v1455
  %v1457 = vpop.f32.mrb[0].mxu0
  %v1458 = vpop.f32.mrb[0].mxu0
  %1459 = vdwg.mxu0
  %1460 = vst [vmem:[%s3] sm:$0xff] %v1290
  %1461 = vst [vmem:[%s3 + $0x8] sm:$0xff] %v1292
  %1462 = vst [vmem:[%s3 + $0x10] sm:$0xff] %v1372
  %1463 = vst [vmem:[%s3 + $0x18] sm:$0xff] %v1374
  %1464 = vst [vmem:[%s3 + $0x20] sm:$0xff] %v1454
  %1465 = vst [vmem:[%s3 + $0x28] sm:$0xff] %v1456
  // Predicated region
  $region14: #{dim_mapper.1} parent=0 // pred_check
    _
  $region15: #{dim_mapper.1} parent=0 // pred_check_branch
    %1467 = sbr.rel (0) target = $region17
  $region16: #{dim_mapper.1} parent=0 // pred_region
    _
  $region17: #{dim_mapper.1} parent=0 // pred_fallthru
    _
  // Predicated region
  $region18: #{dim_mapper.1} parent=0 // pred_check
    _
  $region19: #{dim_mapper.1} parent=0 // pred_check_branch
    %1469 = sbr.rel (0) target = $region21
  $region20: #{dim_mapper.1} parent=0 // pred_region
    _
  $region21: #{dim_mapper.1} parent=0 // pred_fallthru
    _

</llo_original>
